<compile_context>
chip_gen: v7x
topology: tpu7x:2x2x1
jax: 0.10.0
libtpu: 0.0.40
codegen_flags: <defaults>
</compile_context>

<pallas_src>
import functools

import jax
import jax.numpy as jnp
from jax import lax
from jax.experimental import pallas as pl
from jax.experimental.pallas import tpu as pltpu


def _energies_kernel(hw_ref, enc_ref, out_ref):
    """One (batch-tile, seq-tile) grid step: energies for this tile.

    hw_ref  : (b_tile, H)          hidden @ W (precomputed in the wrapper)
    enc_ref : (s_tile, b_tile, H)  encoder outputs, native (S, B, H) order
    out_ref : (b_tile, s_tile)     energies block (lane axis = sequence)
    """
    enc = enc_ref[...]                                   # (st, bt, H)
    hw = hw_ref[...]                                     # (bt, H)
    # Contraction over H: VPU multiply + XLU lane reduce.  The MXU is idle in
    # this kernel; if profiling on v7x shows the XLU reduce has become the
    # binding unit, this is the place to reformulate the contraction as a
    # (s_tile, bt*H) @ block-diag(hw) MXU matmul.
    e_sb = jnp.sum(enc * hw[None, :, :], axis=-1)        # (st, bt)
    # Small per-tile transpose (XLU) so the HBM store is lane-dense in S.
    out_ref[...] = jnp.transpose(e_sb).astype(out_ref.dtype)   # (bt, st)


def _softmax_kernel(e_ref, out_ref, *, seq_len):
    """Masked softmax over the (padded) sequence axis for one batch tile."""
    e = e_ref[...]                                       # (bt, S_pad)
    if seq_len != e.shape[-1]:                           # static
        col = lax.broadcasted_iota(jnp.int32, e.shape, 1)
        e = jnp.where(col < seq_len, e, -jnp.inf)        # neutralize padded tail
    m = jnp.max(e, axis=-1, keepdims=True)
    p = jnp.exp(e - m)
    denom = jnp.sum(p, axis=-1, keepdims=True)
    # pl.reciprocal(approx=True) (EUP) was evaluated but its ~2^-12 relative
    # error exceeds the agreement we verify against the reference, so keep the
    # exact reciprocal in this tiny once-per-batch-tile epilogue.
    out_ref[...] = (p * pl.reciprocal(denom)).astype(out_ref.dtype)


def _vmem_capacity_bytes():
    """Physical per-core VMEM, with a conservative (v7x-sized) fallback."""
    try:
        cap = int(getattr(pltpu.get_tpu_info(), "vmem_capacity_bytes", 0))
        if cap > 0:
            return cap
    except Exception:
        pass
    return 64 * 1024 * 1024


def attn_general(hidden, encoder_outputs, w, bias=None, *,
                 enc_block_budget_bytes=None):
    """Luong 'general' attention weights.

    hidden:          (1, B, H)
    encoder_outputs: (S, B, H)   -- consumed in its native layout (no transpose)
    w, bias:         nn.Linear(H, H) parameters (w is [out, in]).  bias only
                     enters the energies through hidden . bias, a constant
                     along the softmax axis, so it cancels exactly and is unused.
    returns:         (B, 1, S) float32 softmax attention weights
    """
    del bias                                   # softmax(x + c) == softmax(x)
    _, B, H = hidden.shape
    S = encoder_outputs.shape[0]
    itemsize = encoder_outputs.dtype.itemsize

    # hidden . (W e + b) == (hidden @ W) . e + const  ->  precompute hw once.
    # O(B*H^2) flops, negligible vs the S*B*H HBM read; keeps W out of VMEM.
    hw = jnp.dot(hidden[0], w, preferred_element_type=jnp.float32)   # (B, H)

    # ---- per-generation VMEM budgets ---------------------------------------
    vmem_cap = _vmem_capacity_bytes()
    if vmem_cap >= 96 * 1024 * 1024:           # v5e / v6e: 128 MiB physical VMEM
        enc_budget = enc_block_budget_bytes or 12 * 1024 * 1024
        vmem_ceiling = 100 * 1024 * 1024
    else:                                      # v7x: 64 MiB per TensorCore
        enc_budget = enc_block_budget_bytes or 5 * 1024 * 1024
        vmem_ceiling = 52 * 1024 * 1024

    # ---- batch tile: prefer the full batch (contiguous encoder DMA, single hw
    # fetch); split into 8-row multiples only if a 128-row S tile of the full
    # batch would not fit the per-block budget.
    b_tile = B
    if B > 8 and B % 8 == 0:
        while (b_tile > 8 and b_tile % 16 == 0
               and 128 * b_tile * H * itemsize > enc_budget):
            b_tile //= 2
    n_b = B // b_tile

    # ---- sequence tile: multiple of 128, sized to the VMEM budget -----------
    s_tile = (enc_budget // (b_tile * H * itemsize)) // 128 * 128
    s_tile = max(128, min(2048, s_tile))
    if S <= s_tile:
        s_tile = S                             # single exact tile, no padding
    n_s = pl.cdiv(S, s_tile)
    s_pad = n_s * s_tile                       # tail columns masked in pass 2

    # ---- pass 1: energies[b, s] = hw[b] . enc[s, b] --------------------------
    enc_block = s_tile * b_tile * H * itemsize
    small_blocks = 2 * (b_tile * H + b_tile * s_tile) * 4
    vmem_limit1 = int(min(vmem_ceiling,
                          max(16 * 1024 * 1024,
                              4 * enc_block + small_blocks + (8 << 20))))

    energies = pl.pallas_call(
        _energies_kernel,
        out_shape=jax.ShapeDtypeStruct((B, s_pad), jnp.float32),
        grid=(n_b, n_s),
        in_specs=[
            pl.BlockSpec((b_tile, H), lambda b, s: (b, 0)),             # hw
            pl.BlockSpec((s_tile, b_tile, H), lambda b, s: (s, b, 0)),  # enc
        ],
        out_specs=pl.BlockSpec((b_tile, s_tile), lambda b, s: (b, s)),
        compiler_params=pltpu.CompilerParams(
            dimension_semantics=("parallel", "parallel"),
            vmem_limit_bytes=vmem_limit1,
        ),
    )(hw, encoder_outputs)

    # ---- pass 2: masked softmax over S (tiny: (B, S_pad) in and out) --------
    b_tile2 = 8 if (B > 8 and B % 8 == 0) else B
    n_b2 = B // b_tile2
    sm_block = b_tile2 * s_pad * 4
    vmem_limit2 = int(min(vmem_ceiling,
                          max(16 * 1024 * 1024, 8 * sm_block + (4 << 20))))

    attn = pl.pallas_call(
        functools.partial(_softmax_kernel, seq_len=S),
        out_shape=jax.ShapeDtypeStruct((B, s_pad), jnp.float32),
        grid=(n_b2,),
        in_specs=[pl.BlockSpec((b_tile2, s_pad), lambda b: (b, 0))],
        out_specs=pl.BlockSpec((b_tile2, s_pad), lambda b: (b, 0)),
        compiler_params=pltpu.CompilerParams(
            dimension_semantics=("parallel",),
            vmem_limit_bytes=vmem_limit2,
        ),
    )(energies)

    return attn[:, :S][:, None, :]             # (B, 1, S)


def attn_general_ref(hidden, encoder_outputs, w, bias):
    """Pure-JAX reference mirroring the PyTorch loops (bias included)."""
    proj = jnp.einsum('sbh,oh->sbo', encoder_outputs, w) + bias        # (S, B, H)
    energies = jnp.einsum('bh,sbh->bs', hidden[0], proj)               # (B, S)
    return jax.nn.softmax(energies, axis=1)[:, None, :]


def _run_case(key, B, S, H, **kwargs):
    k1, k2, k3, k4 = jax.random.split(key, 4)
    w = jax.random.normal(k1, (H, H), dtype=jnp.float32) * (1.0 / jnp.sqrt(H))
    bias = jax.random.normal(k2, (H,), dtype=jnp.float32) * 0.01
    hidden = jax.random.normal(k3, (1, B, H), dtype=jnp.float32)
    encoder_outputs = jax.random.normal(k4, (S, B, H), dtype=jnp.float32)

    out = jax.block_until_ready(
        attn_general(hidden, encoder_outputs, w, bias, **kwargs))
    ref = attn_general_ref(hidden, encoder_outputs, w, bias)

    assert out.shape == (B, 1, S)
    # Tolerance covers f32 reassociation only: the kernel drops the softmax-
    # invariant hidden.bias term and evaluates (hidden @ W) . enc instead of
    # hidden . (W @ enc + bias); a real bug shows up as O(0.1 .. 1) errors.
    assert jnp.allclose(out, ref, atol=5e-5, rtol=5e-5), (B, S, H)


if __name__ == "__main__":
    key = jax.random.PRNGKey(0)
    k_a, k_b, k_c = jax.random.split(key, 3)

    # Shapes implied by the module's forward: hidden (1, B, H), enc (S, B, H).
    _run_case(k_a, B=2, S=8, H=32)        # tiny: single (batch, seq) tile
    _run_case(k_b, B=16, S=40, H=32)      # full-batch tile, single exact S tile
    # Tiny block budget forces batch splitting (b_tile=8), multiple parallel
    # S tiles (n_s=3) and the masked padded tail (S=300 < s_pad=384).
    _run_case(k_c, B=16, S=300, H=32, enc_block_budget_bytes=128 * 1024)

    print("KERNEL_OK")
</pallas_src>

<mosaic_0001>
module attributes {stable_mosaic.version = 11 : i64} {
  func.func @_energies_kernel(%arg0: i32, %arg1: i32, %arg2: memref<2x32xf32, #tpu.memory_space<vmem>>, %arg3: memref<8x2x32xf32, #tpu.memory_space<vmem>>, %arg4: memref<2x8xf32, #tpu.memory_space<vmem>>) attributes {dimension_semantics = [#tpu.dimension_semantics<parallel>, #tpu.dimension_semantics<parallel>], iteration_bounds = array<i64: 1, 1>, scalar_prefetch = 0 : i64, scratch_operands = 0 : i64, tpu.core_type = #tpu.core_type<tc>, window_params = [{transform_indices = @transform_0, window_bounds = array<i64: 2, 32>}, {transform_indices = @transform_1, window_bounds = array<i64: 8, 2, 32>}, {transform_indices = @transform_2, window_bounds = array<i64: 2, 8>}]} {
    %c0 = arith.constant 0 : index
    %c0_0 = arith.constant 0 : index
    %c0_1 = arith.constant 0 : index
    %0 = vector.load %arg3[%c0, %c0_0, %c0_1] : memref<8x2x32xf32, #tpu.memory_space<vmem>>, vector<8x2x32xf32>
    %c0_2 = arith.constant 0 : index
    %c0_3 = arith.constant 0 : index
    %1 = vector.load %arg2[%c0_2, %c0_3] : memref<2x32xf32, #tpu.memory_space<vmem>>, vector<2x32xf32>
    %2 = vector.shape_cast %1 : vector<2x32xf32> to vector<1x2x32xf32>
    %3 = vector.broadcast %2 : vector<1x2x32xf32> to vector<8x2x32xf32>
    %4 = arith.mulf %0, %3 : vector<8x2x32xf32>
    %cst = arith.constant dense<0.000000e+00> : vector<8x2xf32>
    %5 = vector.multi_reduction <add>, %4, %cst [2] : vector<8x2x32xf32> to vector<8x2xf32>
    %6 = tpu.transpose %5, [1, 0] : vector<8x2xf32> -> vector<2x8xf32>
    %c0_4 = arith.constant 0 : index
    %c0_5 = arith.constant 0 : index
    %7 = vector.load %arg4[%c0_4, %c0_5] : memref<2x8xf32, #tpu.memory_space<vmem>>, vector<2x8xf32>
    tpu.vector_store %arg4[%c0_4, %c0_5], %6 {strides = array<i32>} : memref<2x8xf32, #tpu.memory_space<vmem>>, vector<2x8xf32>,
    return
  }
  func.func @transform_0(%arg0: i32, %arg1: i32) -> (i32, i32) {
    %c0_i32 = arith.constant 0 : i32
    %c0_i32_0 = arith.constant 0 : i32
    return %arg0, %c0_i32 : i32, i32
  }
  func.func @transform_1(%arg0: i32, %arg1: i32) -> (i32, i32, i32) {
    %c0_i32 = arith.constant 0 : i32
    %c0_i32_0 = arith.constant 0 : i32
    return %arg1, %arg0, %c0_i32 : i32, i32, i32
  }
  func.func @transform_2(%arg0: i32, %arg1: i32) -> (i32, i32) {
    %c0_i32 = arith.constant 0 : i32
    return %arg0, %arg1 : i32, i32
  }
}

</mosaic_0001>

<llo_original>
// kernel: tpu_custom_call.1
$region0: #{tpu_custom_call.1}
  #allocation0 [shape = 'u32[]', space=smem, size = 0x4, offset = 0x4, fixed_abs, tag = 'smem constant byte address 0x4 - core index']
  #allocation1 [shape = 'u32[144,128]{1,0:T(1,128)}', space=vmem, size = 0x12000, scoped, tag = 'internal scratch']
  %s0 = inlined_call_operand.hbm [shape: f32[2,32], index: 0, kind: input, shape index: {}]
  %s1 = inlined_call_operand.hbm [shape: f32[8,2,32], index: 1, kind: input, shape index: {}]
  %s2 = inlined_call_operand.hbm [shape: f32[2,8], index: 2, kind: output, shape index: {}]
  %s3 = sld [smem:[#allocation0]]
  $region26: #{tpu_custom_call.1} parent=0
    _
  %s5 = ssub.s32 1, %s3
  %s6 = scalar_select 0, %s5, %s3
  $region1: #{tpu_custom_call.1} parent=0
    #allocation2 [shape = 'u8[1024]{0}', space=vmem, size = 0x400, scoped, tag = 'input window, operand 0, single buffered']
    #allocation3 [shape = 's32[1]{0}', space=sflag, size = 0x4, scoped, tag = 'scoped memory for tpu_custom_call.1']
    #allocation4 [shape = 's32[1]{0}', space=sflag, size = 0x4, scoped, tag = 'scoped memory for tpu_custom_call.1']
    #allocation5 [shape = 'u8[8192]{0}', space=vmem, size = 0x2000, scoped, tag = 'input window, operand 1, single buffered']
    #allocation6 [shape = 's32[1]{0}', space=sflag, size = 0x4, scoped, tag = 'scoped memory for tpu_custom_call.1']
    #allocation7 [shape = 'u8[1024]{0}', space=vmem, size = 0x400, scoped, tag = 'output window, operand 0, single buffered']
    %7 = vsyncpa [#allocation3], 0
    %8 = vsyncpa [#allocation6], 0
    %9 = vsyncpa [#allocation4], 0
    // Predicated region
    $region2: #{tpu_custom_call.1} parent=1 // pred_check
      _
    $region3: #{tpu_custom_call.1} parent=1 // pred_check_branch
      %11 = sbr.rel (0) target = $region5
    $region4: #{tpu_custom_call.1} parent=1 // pred_region
      %s13 = ssub.s32 32, 32
      %14 = vsyncadd [#allocation3], %s13
      %s16 = sshll.u32 [#allocation2], 4
      %s17 = int_to_ptr.vmem [resolvable:$true] %s16
      %19 = dma.hbm_to_vmem [thread:$0]  %s0, 32, %s17, [#allocation3]
    $region5: #{tpu_custom_call.1} parent=1 // pred_fallthru
      _
    // Predicated region
    $region6: #{tpu_custom_call.1} parent=1 // pred_check
      _
    $region7: #{tpu_custom_call.1} parent=1 // pred_check_branch
      %21 = sbr.rel (0) target = $region9
    $region8: #{tpu_custom_call.1} parent=1 // pred_region
      %s23 = ssub.s32 256, 256
      %24 = vsyncadd [#allocation6], %s23
      %s25 = sshll.u32 [#allocation5], 4
      %s26 = int_to_ptr.vmem [resolvable:$true] %s25
      %31 = dma.hbm_to_vmem [thread:$0]  %s1, 256, %s26, [#allocation6], 32, 32, 2
    $region9: #{tpu_custom_call.1} parent=1 // pred_fallthru
      _
    // Predicated region
    $region10: #{tpu_custom_call.1} parent=1 // pred_check
      _
    $region11: #{tpu_custom_call.1} parent=1 // pred_check_branch
      %33 = sbr.rel (0) target = $region13
    $region12: #{tpu_custom_call.1} parent=1 // pred_region
      %34 = dma.done [#allocation3], 32
    $region13: #{tpu_custom_call.1} parent=1 // pred_fallthru
      _
    // Predicated region
    $region14: #{tpu_custom_call.1} parent=1 // pred_check
      _
    $region15: #{tpu_custom_call.1} parent=1 // pred_check_branch
      %36 = sbr.rel (0) target = $region17
    $region16: #{tpu_custom_call.1} parent=1 // pred_region
      %37 = dma.done [#allocation6], 256
    $region17: #{tpu_custom_call.1} parent=1 // pred_fallthru
      _
    %v38 = vld [vmem:[#allocation5] sm:$0x3]
    %v39 = vld [vmem:[#allocation5 + $0x2] sm:$0x3]
    %v40 = vld [vmem:[#allocation5 + $0x4] sm:$0x3]
    %v41 = vld [vmem:[#allocation5 + $0x6] sm:$0x3]
    %v42 = vld [vmem:[#allocation5 + $0x8] sm:$0x3]
    %v43 = vld [vmem:[#allocation5 + $0xa] sm:$0x3]
    %v44 = vld [vmem:[#allocation5 + $0xc] sm:$0x3]
    %v45 = vld [vmem:[#allocation5 + $0xe] sm:$0x3]
    %v46 = vld [vmem:[#allocation2] sm:$0x3]
    %v47 = vmul.f32 %v38, %v46
    %v48 = vmul.f32 %v39, %v46
    %v49 = vmul.f32 %v40, %v46
    %v50 = vmul.f32 %v41, %v46
    %v51 = vmul.f32 %v42, %v46
    %v52 = vmul.f32 %v43, %v46
    %v53 = vmul.f32 %v44, %v46
    %v54 = vmul.f32 %v45, %v46
    %vm55 = vcmask 254976
    %v56 = vsel %vm55, %v47, 0.0
    %57 = vadd.xlane.f32.xlu0 %v56
    %v58 = vpop.xlane.xlu0 %57
    %v59 = vsel %vm55, %v48, 0.0
    %60 = vadd.xlane.f32.xlu0 %v59
    %v61 = vpop.xlane.xlu0 %60
    %v62 = vsel %vm55, %v49, 0.0
    %63 = vadd.xlane.f32.xlu0 %v62
    %v64 = vpop.xlane.xlu0 %63
    %v65 = vsel %vm55, %v50, 0.0
    %66 = vadd.xlane.f32.xlu0 %v65
    %v67 = vpop.xlane.xlu0 %66
    %v68 = vsel %vm55, %v51, 0.0
    %69 = vadd.xlane.f32.xlu0 %v68
    %v70 = vpop.xlane.xlu0 %69
    %v71 = vsel %vm55, %v52, 0.0
    %72 = vadd.xlane.f32.xlu0 %v71
    %v73 = vpop.xlane.xlu0 %72
    %v74 = vsel %vm55, %v53, 0.0
    %75 = vadd.xlane.f32.xlu0 %v74
    %v76 = vpop.xlane.xlu0 %75
    %v77 = vsel %vm55, %v54, 0.0
    %78 = vadd.xlane.f32.xlu0 %v77
    %v79 = vpop.xlane.xlu0 %78
    %v88 = vlaneseq
    %v89 = vand.u32 %v88, 127
    %v90 = vlaneseq
    %v91 = vshrl.u32 %v90, 7
    %v92 = vsub.s32 %v89, %v91
    %v93 = vrot.slane %v58, %v92
    %v94 = vlaneseq
    %v95 = vshrl.u32 %v94, 7
    %v96 = vsub.s32 %v89, %v95
    %v97 = vrot.slane %v61, %v96
    %v98 = vlaneseq
    %v99 = vshrl.u32 %v98, 7
    %v100 = vsub.s32 %v89, %v99
    %v101 = vrot.slane %v64, %v100
    %v102 = vlaneseq
    %v103 = vshrl.u32 %v102, 7
    %v104 = vsub.s32 %v89, %v103
    %v105 = vrot.slane %v67, %v104
    %v106 = vlaneseq
    %v107 = vshrl.u32 %v106, 7
    %v108 = vsub.s32 %v89, %v107
    %v109 = vrot.slane %v70, %v108
    %v110 = vlaneseq
    %v111 = vshrl.u32 %v110, 7
    %v112 = vsub.s32 %v89, %v111
    %v113 = vrot.slane %v73, %v112
    %v114 = vlaneseq
    %v115 = vshrl.u32 %v114, 7
    %v116 = vsub.s32 %v89, %v115
    %v117 = vrot.slane %v76, %v116
    %v118 = vlaneseq
    %v119 = vshrl.u32 %v118, 7
    %v120 = vsub.s32 %v89, %v119
    %v121 = vrot.slane %v79, %v120
    %vm122 = vcmask 1041409
    %v123 = vsel %vm122, %v97, %v93
    %vm124 = vcmask 1042434
    %v125 = vsel %vm124, %v101, %v123
    %vm126 = vcmask 1043459
    %v127 = vsel %vm126, %v105, %v125
    %vm128 = vcmask 1044484
    %v129 = vsel %vm128, %v109, %v127
    %vm130 = vcmask 1045509
    %v131 = vsel %vm130, %v113, %v129
    %vm132 = vcmask 1046534
    %v133 = vsel %vm132, %v117, %v131
    %vm134 = vcmask 1047559
    %v135 = vsel %vm134, %v121, %v133
    %137 = vxpose.xlu0.b32.start [1/16] %v135, 128
    %138 = vxpose.xlu0.b32.cont [2/16] 0.0, 128
    %139 = vxpose.xlu0.b32.cont [3/16] 0.0, 128
    %140 = vxpose.xlu0.b32.cont [4/16] 0.0, 128
    %141 = vxpose.xlu0.b32.cont [5/16] 0.0, 128
    %142 = vxpose.xlu0.b32.cont [6/16] 0.0, 128
    %143 = vxpose.xlu0.b32.cont [7/16] 0.0, 128
    %144 = vxpose.xlu0.b32.cont [8/16] 0.0, 128
    %145 = vxpose.xlu0.b32.cont [9/16] 0.0, 128
    %146 = vxpose.xlu0.b32.cont [10/16] 0.0, 128
    %147 = vxpose.xlu0.b32.cont [11/16] 0.0, 128
    %148 = vxpose.xlu0.b32.cont [12/16] 0.0, 128
    %149 = vxpose.xlu0.b32.cont [13/16] 0.0, 128
    %150 = vxpose.xlu0.b32.cont [14/16] 0.0, 128
    %151 = vxpose.xlu0.b32.cont [15/16] 0.0, 128
    %152 = vxpose.xlu0.b32.end [16/16] 0.0, 128
    %v153 = vpop.trf.xlu0
    %v154 = vpop.trf.xlu0
    %v155 = vpop.trf.xlu0
    %v156 = vpop.trf.xlu0
    %v157 = vpop.trf.xlu0
    %v158 = vpop.trf.xlu0
    %v159 = vpop.trf.xlu0
    %v160 = vpop.trf.xlu0
    %v161 = vpop.trf.xlu0
    %v162 = vpop.trf.xlu0
    %v163 = vpop.trf.xlu0
    %v164 = vpop.trf.xlu0
    %v165 = vpop.trf.xlu0
    %v166 = vpop.trf.xlu0
    %v167 = vpop.trf.xlu0
    %v168 = vpop.trf.xlu0
    %vm169 = vcmask 58368
    %170 = vst.msk [vmem:[#allocation7] sm:$0x3] %vm169, %v153
    // Predicated region
    $region18: #{tpu_custom_call.1} parent=1 // pred_check
      _
    $region19: #{tpu_custom_call.1} parent=1 // pred_check_branch
      %172 = sbr.rel (0) target = $region21
    $region20: #{tpu_custom_call.1} parent=1 // pred_region
      %s174 = ssub.s32 32, 32
      %175 = vsyncadd [#allocation4], %s174
      %s177 = sshll.u32 [#allocation7], 4
      %s178 = int_to_ptr.vmem [resolvable:$true] %s177
      %180 = dma.vmem_to_hbm [thread:$0]  %s178, 32, %s2, [#allocation4]
    $region21: #{tpu_custom_call.1} parent=1 // pred_fallthru
      _
    // Predicated region
    $region22: #{tpu_custom_call.1} parent=1 // pred_check
      _
    $region23: #{tpu_custom_call.1} parent=1 // pred_check_branch
      %182 = sbr.rel (0) target = $region25
    $region24: #{tpu_custom_call.1} parent=1 // pred_region
      %183 = dma.done [#allocation4], 32
    $region25: #{tpu_custom_call.1} parent=1 // pred_fallthru
      _
    %184 = vsyncpa [#allocation3], 1
    %185 = vsyncpa [#allocation6], 1
    %186 = vsyncpa [#allocation4], 1

</llo_original>
